<compile_context>
chip_gen: v6e
topology: v6e:2x2x1
jax: 0.10.0
libtpu: 0.0.40
codegen_flags: <defaults>
</compile_context>

<pallas_src>
import functools
import math

import jax
import jax.numpy as jnp
from jax import lax
from jax.experimental import pallas as pl
from jax.experimental.pallas import tpu as pltpu

_MiB = 1024 * 1024


def _tpu_config():
    """(vmem_limit_bytes, num_tensorcores, has_bf16_eup) for the local TPU generation."""
    gen = 0
    try:
        kind = jax.devices()[0].device_kind.lower()
        for g in (7, 6, 5, 4):
            if str(g) in kind:
                gen = g
                break
    except Exception:
        gen = 0
    vmem_cap = 0
    try:
        vmem_cap = int(pltpu.get_tpu_info().vmem_capacity_bytes)
    except Exception:
        vmem_cap = 0
    if vmem_cap <= 0:
        # v5e/v6e: 128 MiB per TensorCore; v7x: 64 MiB; unknown: be conservative.
        vmem_cap = 128 * _MiB if gen in (5, 6) else 64 * _MiB
    if gen >= 7:
        vmem_cap = min(vmem_cap, 64 * _MiB)      # per-TensorCore VMEM on v7x
    vmem_limit = int(vmem_cap * 0.85)            # ~85% of physical, headroom for scratch
    num_cores = 2 if gen >= 7 else 1             # v7x has 2 TensorCores per chip
    bf16_eup = gen >= 6                          # v6e/v7x EUP has a bf16 exp path
    return vmem_limit, num_cores, bf16_eup


def _pick_tile(total, bytes_per_row, budget_bytes, *, multiple=8, max_tile=1024):
    """Largest `multiple`-aligned divisor of `total` (<= max_tile) whose per-tile working
    set fits `budget_bytes`; else the smallest aligned divisor; else the full dim
    (block == full dim is always a legal BlockSpec)."""
    upper = min(total, max_tile)
    upper -= upper % multiple
    cands = [t for t in range(upper, 0, -multiple) if total % t == 0]
    for t in cands:                               # descending
        if t * bytes_per_row <= budget_bytes:
            return t
    return cands[-1] if cands else total


def _resident_spec(shape):
    """Full-array VMEM-resident input: constant index_map (fetched once) and
    single-buffered — Pallas double-buffers by default, which would waste a whole
    extra copy of z for zero pipelining benefit."""
    index_map = lambda *_: (0,) * len(shape)
    try:
        return pl.BlockSpec(shape, index_map,
                            pipeline_mode=pl.Buffered(buffer_count=1))
    except Exception:   # older JAX without pipeline_mode / Buffered
        return pl.BlockSpec(shape, index_map)


def _normalize_scale_kernel(xi_ref, xj_ref, z_ref, pos_ref, *, scale, matmul_dtype):
    """Per batch tile: L2-normalize rows of x_i/x_j, fold in sqrt(1/temp), emit
    z = [zi; zj] in the matmul dtype plus the per-tile sum of the positive
    similarities / temp (one scalar per grid step — no lane-sparse (n,1) store)."""
    xi = xi_ref[...].astype(jnp.float32)      # (tb, d)
    xj = xj_ref[...].astype(jnp.float32)

    # F.normalize(x, dim=1) == x / max(||x||, 1e-12) == x * rsqrt(max(||x||^2, 1e-24))
    eps2 = 1e-24
    inv_i = lax.rsqrt(jnp.maximum(jnp.sum(xi * xi, axis=1, keepdims=True), eps2)) * scale
    inv_j = lax.rsqrt(jnp.maximum(jnp.sum(xj * xj, axis=1, keepdims=True), eps2)) * scale
    zi = xi * inv_i                           # normalize(x_i) * sqrt(1/temp)
    zj = xj * inv_j

    z_ref[0] = zi.astype(matmul_dtype)
    z_ref[1] = zj.astype(matmul_dtype)

    # positives: diag(sim, +/-bs)/temp == zi . zj per row (scale^2 == 1/temp folded in);
    # only the tile sum is needed for the scalar loss.
    pos_rows = jnp.sum(zi * zj, axis=1, keepdims=True)            # (tb, 1) f32
    pos_ref[...] = jnp.sum(pos_rows, axis=0, keepdims=True).reshape(1, 1, 1)


def _ntxent_rows_kernel(z_ref, out_ref, *, tm, ck, n, exp_dtype):
    """Per row tile of z (full z VMEM-resident): column-blocked MXU matmul gives
    sim/temp; the diagonal is masked with -inf BEFORE exp (no exp(diag) subtraction,
    no cancellation); exp runs on the EUP (bf16 on v6e/v7x) with f32 row-sum
    accumulation; the tile's sum of log(neg_i) is written as one scalar."""
    row_start = pl.multiple_of(pl.program_id(0) * tm, tm)
    z_rows = z_ref[...] if tm == n else z_ref[pl.ds(row_start, tm), :]    # (tm, d)
    row_ids = lax.broadcasted_iota(jnp.int32, (tm, ck), 0) + row_start

    def col_block(col_start):
        z_cols = z_ref[...] if ck == n else z_ref[pl.ds(col_start, ck), :]
        # (tm, d) x (ck, d) contracted on d -> (tm, ck); bf16/f32 in, f32 accumulation.
        s = lax.dot_general(z_rows, z_cols,
                            dimension_numbers=(((1,), (1,)), ((), ())),
                            preferred_element_type=jnp.float32)   # already sim/temp
        col_ids = lax.broadcasted_iota(jnp.int32, (tm, ck), 1) + col_start
        s = jnp.where(row_ids == col_ids, -jnp.inf, s)            # mask j == i
        e = jnp.exp(s.astype(exp_dtype))                          # EUP (bf16 on v6e/v7x)
        return jnp.sum(e, axis=1, keepdims=True, dtype=jnp.float32)

    if ck == n:
        neg = col_block(0)
    else:
        n_blocks = n // ck

        def body(c, acc):
            return acc + col_block(pl.multiple_of(c * ck, ck))

        neg = lax.fori_loop(0, n_blocks, body, jnp.zeros((tm, 1), jnp.float32),
                            unroll=bool(n_blocks <= 8))

    out_ref[...] = jnp.sum(jnp.log(neg), axis=0, keepdims=True).reshape(1, 1, 1)


def contrastive_pair_loss(x_i, x_j, temp=0.5, matmul_dtype=jnp.bfloat16):
    """NT-Xent loss over a batch of positive pairs. x_i, x_j: (bs, D).

    `temp` is a static hyperparameter (a fixed registered buffer in the PyTorch
    module). `matmul_dtype=bf16` feeds the MXU at full rate with f32 accumulation
    (and enables the bf16 EUP exp on v6e/v7x); pass jnp.float32 for bit-closer
    results (keeps the exp in f32 too).
    """
    bs, d = x_i.shape
    assert x_j.shape == (bs, d)
    n = 2 * bs
    scale = float(1.0 / math.sqrt(float(temp)))        # sqrt(1/temp), folded into z
    z_dt = jnp.dtype(matmul_dtype)
    z_item = z_dt.itemsize
    row_mult = 16 if z_item < 4 else 8                 # bf16 packs 16 rows per vreg

    vmem_limit, num_cores, bf16_eup = _tpu_config()
    exp_dtype = (jnp.bfloat16
                 if (bf16_eup and z_dt != jnp.dtype(jnp.float32)) else jnp.float32)

    # ---- kernel 1: normalize + scale + positive-pair partial sums -----------------
    # per-row working set: double-buffered f32 inputs, f32 zi/zj temps, double-
    # buffered z output — budgeted against an explicit scoped-VMEM limit (the v5e
    # default is only 16 MiB).
    k1_row_bytes = d * (4 * 4 + 2 * 4 + 2 * 2 * z_item) + 64
    max_tb = 1024 if num_cores == 1 else max(min(1024, bs // num_cores), 1)
    tb = _pick_tile(bs, k1_row_bytes, int(vmem_limit * 0.6),
                    multiple=row_mult, max_tile=max_tb)
    nb_tiles = bs // tb

    z, pos_part = pl.pallas_call(
        functools.partial(_normalize_scale_kernel, scale=scale,
                          matmul_dtype=matmul_dtype),
        grid=(nb_tiles,),
        in_specs=[pl.BlockSpec((tb, d), lambda b: (b, 0)),
                  pl.BlockSpec((tb, d), lambda b: (b, 0))],
        out_specs=(pl.BlockSpec((2, tb, d), lambda b: (0, b, 0)),
                   pl.BlockSpec((1, 1, 1), lambda b: (b, 0, 0))),
        out_shape=(jax.ShapeDtypeStruct((2, bs, d), matmul_dtype),
                   jax.ShapeDtypeStruct((nb_tiles, 1, 1), jnp.float32)),
        compiler_params=pltpu.CompilerParams(
            dimension_semantics=("parallel",),
            vmem_limit_bytes=vmem_limit),
    )(x_i, x_j)

    # (2, bs, d) -> (2*bs, d) is a free row-major view (no concat copy).
    z2 = z.reshape(n, d)

    # ---- kernel 2: row-tiled, column-blocked similarity + log-space reduction -----
    # z stays VMEM-resident (constant index_map, single-buffered); the row grid is
    # "parallel" so v7x's two TensorCores split it; each grid step emits one scalar
    # partial sum instead of a lane-sparse (n,1) store + external big reduce.
    if n <= 2048:
        ck = n
    else:
        ck = n
        for c in range(2048, 127, -128):               # largest 128-multiple divisor
            if n % c == 0:
                ck = c
                break

    z_resident = n * d * z_item                        # x1 thanks to Buffered(1)
    k2_budget = max(int((vmem_limit - z_resident) * 0.6), 2 * _MiB)
    k2_row_bytes = ck * 12 + d * z_item + 256          # sim f32 + exp + iota/mask temps
    max_tm = 1024 if num_cores == 1 else max(min(1024, n // num_cores), 1)
    tm = _pick_tile(n, k2_row_bytes, k2_budget, multiple=row_mult, max_tile=max_tm)
    nr_tiles = n // tm
    # TODO(synk): if z itself (n*d*itemsize) no longer fits the VMEM limit, stream
    # column blocks of z over a second ("arbitrary") grid axis instead of keeping it
    # resident.

    per_tile = pl.pallas_call(
        functools.partial(_ntxent_rows_kernel, tm=tm, ck=ck, n=n, exp_dtype=exp_dtype),
        grid=(nr_tiles,),
        in_specs=[_resident_spec((n, d))],
        out_specs=pl.BlockSpec((1, 1, 1), lambda i: (i, 0, 0)),
        out_shape=jax.ShapeDtypeStruct((nr_tiles, 1, 1), jnp.float32),
        compiler_params=pltpu.CompilerParams(
            dimension_semantics=("parallel",),
            vmem_limit_bytes=vmem_limit),
        cost_estimate=pl.CostEstimate(flops=2 * n * n * d,
                                      transcendentals=n * n,
                                      bytes_accessed=n * d * z_item + nr_tiles * 4),
    )(z2)

    # loss = [sum_i log(sum_{j!=i} exp(sim_ij/temp)) - sum_i sim_pos_i/temp] / n;
    # each positive pair contributes to two rows, hence the factor 2.
    return (jnp.sum(per_tile) - 2.0 * jnp.sum(pos_part)) / n


def _reference_loss(x_i, x_j, temp=0.5):
    """Pure-JAX reference mirroring the PyTorch forward (full f32)."""
    eps = 1e-12
    zi = x_i / jnp.maximum(jnp.linalg.norm(x_i, axis=1, keepdims=True), eps)
    zj = x_j / jnp.maximum(jnp.linalg.norm(x_j, axis=1, keepdims=True), eps)
    z = jnp.concatenate([zi, zj], axis=0)
    bs = x_i.shape[0]
    sim = jnp.matmul(z, z.T, precision=lax.Precision.HIGHEST)
    sim_ij = jnp.diagonal(sim, offset=bs)
    sim_ji = jnp.diagonal(sim, offset=-bs)
    pos = jnp.exp(jnp.concatenate([sim_ij, sim_ji]) / temp)
    neg_mask = 1.0 - jnp.eye(2 * bs, dtype=jnp.float32)
    neg = neg_mask * jnp.exp(sim / temp)
    return jnp.sum(-jnp.log(pos / jnp.sum(neg, axis=1))) / (2 * bs)


if __name__ == "__main__":
    bs, hidden = 8, 32
    key = jax.random.PRNGKey(0)
    k1, k2 = jax.random.split(key)
    x_i = jax.random.normal(k1, (bs, hidden), dtype=jnp.float32)
    x_j = jax.random.normal(k2, (bs, hidden), dtype=jnp.float32)

    ref = jax.block_until_ready(_reference_loss(x_i, x_j, temp=0.5))

    # Default (bf16 MXU inputs + bf16 exp on v6e/v7x, f32 accumulation): tolerance
    # covers bf16 rounding of the unit-norm cosines and of the exp values.
    loss = jax.block_until_ready(contrastive_pair_loss(x_i, x_j, temp=0.5))
    assert jnp.isfinite(loss), "kernel produced non-finite loss"
    assert jnp.abs(loss - ref) < 3e-2, f"bf16-path mismatch: kernel={loss} ref={ref}"

    # f32 matmul + f32 exp path (precision escape hatch) should sit even closer.
    loss_f32 = jax.block_until_ready(
        contrastive_pair_loss(x_i, x_j, temp=0.5, matmul_dtype=jnp.float32))
    assert jnp.isfinite(loss_f32), "f32-path produced non-finite loss"
    assert jnp.abs(loss_f32 - ref) < 1e-2, f"f32-path mismatch: kernel={loss_f32} ref={ref}"

    print("KERNEL_OK")
</pallas_src>

<mosaic_0001>
module attributes {stable_mosaic.version = 11 : i64} {
  func.func @_normalize_scale_kernel(%arg0: i32, %arg1: memref<8x32xf32, #tpu.memory_space<vmem>>, %arg2: memref<8x32xf32, #tpu.memory_space<vmem>>, %arg3: memref<2x8x32xbf16, #tpu.memory_space<vmem>>, %arg4: memref<1x1x1xf32, #tpu.memory_space<vmem>>) attributes {dimension_semantics = [#tpu.dimension_semantics<parallel>], iteration_bounds = array<i64: 1>, scalar_prefetch = 0 : i64, scratch_operands = 0 : i64, tpu.core_type = #tpu.core_type<tc>, window_params = [{transform_indices = @transform_0, window_bounds = array<i64: 8, 32>}, {transform_indices = @transform_1, window_bounds = array<i64: 8, 32>}, {transform_indices = @transform_2, window_bounds = array<i64: 2, 8, 32>}, {transform_indices = @transform_3, window_bounds = array<i64: 1, 1, 1>}]} {
    %c0 = arith.constant 0 : index
    %c0_0 = arith.constant 0 : index
    %0 = vector.load %arg1[%c0, %c0_0] : memref<8x32xf32, #tpu.memory_space<vmem>>, vector<8x32xf32>
    %c0_1 = arith.constant 0 : index
    %c0_2 = arith.constant 0 : index
    %1 = vector.load %arg2[%c0_1, %c0_2] : memref<8x32xf32, #tpu.memory_space<vmem>>, vector<8x32xf32>
    %2 = arith.mulf %0, %0 : vector<8x32xf32>
    %cst = arith.constant dense<0.000000e+00> : vector<8xf32>
    %3 = vector.multi_reduction <add>, %2, %cst [1] : vector<8x32xf32> to vector<8xf32>
    %4 = vector.shape_cast %3 : vector<8xf32> to vector<8x1xf32>
    %cst_3 = arith.constant 1.000000e-24 : f32
    %5 = vector.broadcast %cst_3 : f32 to vector<8x1xf32>
    %6 = arith.maximumf %4, %5 : vector<8x1xf32>
    %7 = math.rsqrt %6 : vector<8x1xf32>
    %cst_4 = arith.constant 1.41421354 : f32
    %8 = vector.broadcast %cst_4 : f32 to vector<8x1xf32>
    %9 = arith.mulf %7, %8 : vector<8x1xf32>
    %10 = arith.mulf %1, %1 : vector<8x32xf32>
    %cst_5 = arith.constant dense<0.000000e+00> : vector<8xf32>
    %11 = vector.multi_reduction <add>, %10, %cst_5 [1] : vector<8x32xf32> to vector<8xf32>
    %12 = vector.shape_cast %11 : vector<8xf32> to vector<8x1xf32>
    %cst_6 = arith.constant 1.000000e-24 : f32
    %13 = vector.broadcast %cst_6 : f32 to vector<8x1xf32>
    %14 = arith.maximumf %12, %13 : vector<8x1xf32>
    %15 = math.rsqrt %14 : vector<8x1xf32>
    %cst_7 = arith.constant 1.41421354 : f32
    %16 = vector.broadcast %cst_7 : f32 to vector<8x1xf32>
    %17 = arith.mulf %15, %16 : vector<8x1xf32>
    %18 = vector.broadcast %9 : vector<8x1xf32> to vector<8x32xf32>
    %19 = arith.mulf %0, %18 : vector<8x32xf32>
    %20 = vector.broadcast %17 : vector<8x1xf32> to vector<8x32xf32>
    %21 = arith.mulf %1, %20 : vector<8x32xf32>
    %22 = arith.truncf %19 : vector<8x32xf32> to vector<8x32xbf16>
    %c0_8 = arith.constant 0 : index
    %c0_9 = arith.constant 0 : index
    %c0_10 = arith.constant 0 : index
    %23 = vector.load %arg3[%c0_8, %c0_9, %c0_10] : memref<2x8x32xbf16, #tpu.memory_space<vmem>>, vector<1x8x32xbf16>
    %24 = vector.shape_cast %23 : vector<1x8x32xbf16> to vector<8x32xbf16>
    %25 = vector.shape_cast %22 : vector<8x32xbf16> to vector<1x8x32xbf16>
    tpu.vector_store %arg3[%c0_8, %c0_9, %c0_10], %25 {strides = array<i32>} : memref<2x8x32xbf16, #tpu.memory_space<vmem>>, vector<1x8x32xbf16>,
    %26 = arith.truncf %21 : vector<8x32xf32> to vector<8x32xbf16>
    %c1 = arith.constant 1 : index
    %c0_11 = arith.constant 0 : index
    %c0_12 = arith.constant 0 : index
    %27 = vector.load %arg3[%c1, %c0_11, %c0_12] : memref<2x8x32xbf16, #tpu.memory_space<vmem>>, vector<1x8x32xbf16>
    %28 = vector.shape_cast %27 : vector<1x8x32xbf16> to vector<8x32xbf16>
    %29 = vector.shape_cast %26 : vector<8x32xbf16> to vector<1x8x32xbf16>
    tpu.vector_store %arg3[%c1, %c0_11, %c0_12], %29 {strides = array<i32>} : memref<2x8x32xbf16, #tpu.memory_space<vmem>>, vector<1x8x32xbf16>,
    %30 = arith.mulf %19, %21 : vector<8x32xf32>
    %cst_13 = arith.constant dense<0.000000e+00> : vector<8xf32>
    %31 = vector.multi_reduction <add>, %30, %cst_13 [1] : vector<8x32xf32> to vector<8xf32>
    %32 = vector.shape_cast %31 : vector<8xf32> to vector<8x1xf32>
    %cst_14 = arith.constant dense<0.000000e+00> : vector<1xf32>
    %33 = vector.multi_reduction <add>, %32, %cst_14 [0] : vector<8x1xf32> to vector<1xf32>
    %34 = vector.shape_cast %33 : vector<1xf32> to vector<1x1xf32>
    %35 = vector.shape_cast %34 : vector<1x1xf32> to vector<1x1x1xf32>
    %c0_15 = arith.constant 0 : index
    %c0_16 = arith.constant 0 : index
    %c0_17 = arith.constant 0 : index
    %36 = vector.load %arg4[%c0_15, %c0_16, %c0_17] : memref<1x1x1xf32, #tpu.memory_space<vmem>>, vector<1x1x1xf32>
    tpu.vector_store %arg4[%c0_15, %c0_16, %c0_17], %35 {strides = array<i32>} : memref<1x1x1xf32, #tpu.memory_space<vmem>>, vector<1x1x1xf32>,
    return
  }
  func.func @transform_0(%arg0: i32) -> (i32, i32) {
    %c0_i32 = arith.constant 0 : i32
    %c0_i32_0 = arith.constant 0 : i32
    return %arg0, %c0_i32 : i32, i32
  }
  func.func @transform_1(%arg0: i32) -> (i32, i32) {
    %c0_i32 = arith.constant 0 : i32
    %c0_i32_0 = arith.constant 0 : i32
    return %arg0, %c0_i32 : i32, i32
  }
  func.func @transform_2(%arg0: i32) -> (i32, i32, i32) {
    %c0_i32 = arith.constant 0 : i32
    %c0_i32_0 = arith.constant 0 : i32
    %c0_i32_1 = arith.constant 0 : i32
    return %c0_i32, %arg0, %c0_i32_0 : i32, i32, i32
  }
  func.func @transform_3(%arg0: i32) -> (i32, i32, i32) {
    %c0_i32 = arith.constant 0 : i32
    %c0_i32_0 = arith.constant 0 : i32
    %c0_i32_1 = arith.constant 0 : i32
    return %arg0, %c0_i32, %c0_i32_0 : i32, i32, i32
  }
}

</mosaic_0001>

<llo_original>
// kernel: tpu_custom_call.1
$region0: #{tpu_custom_call.1}
  #allocation0 [shape = 'u32[]', space=smem, size = 0x4, offset = 0x4, fixed_abs, tag = 'smem constant byte address 0x4 - core index']
  #allocation1 [shape = 'u32[144,128]{1,0:T(1,128)}', space=vmem, size = 0x12000, scoped, tag = 'internal scratch']
  %s0 = inlined_call_operand.hbm [shape: f32[8,32], index: 0, kind: input, shape index: {}]
  %s1 = inlined_call_operand.hbm [shape: f32[8,32], index: 1, kind: input, shape index: {}]
  %s2 = inlined_call_operand.hbm [shape: bf16[2,8,32], index: 2, kind: output, shape index: {0}]
  %s3 = inlined_call_operand.hbm [shape: f32[1,1,1], index: 3, kind: output, shape index: {1}]
  %4 = xla_tuple %s2, %s3
  %s5 = sld [smem:[#allocation0]]
  $region34: #{tpu_custom_call.1} parent=0
    _
  %s7 = ssub.s32 1, %s5
  %s8 = scalar_select 0, %s7, %s5
  $region1: #{tpu_custom_call.1} parent=0
    #allocation2 [shape = 'u8[4096]{0}', space=vmem, size = 0x1000, scoped, tag = 'input window, operand 0, single buffered']
    #allocation3 [shape = 's32[1]{0}', space=sflag, size = 0x4, scoped, tag = 'scoped memory for tpu_custom_call.1']
    #allocation4 [shape = 's32[1]{0}', space=sflag, size = 0x4, scoped, tag = 'scoped memory for tpu_custom_call.1']
    #allocation5 [shape = 'u8[4096]{0}', space=vmem, size = 0x1000, scoped, tag = 'input window, operand 1, single buffered']
    #allocation6 [shape = 's32[1]{0}', space=sflag, size = 0x4, scoped, tag = 'scoped memory for tpu_custom_call.1']
    #allocation7 [shape = 'u8[4096]{0}', space=vmem, size = 0x1000, scoped, tag = 'output window, operand 0, single buffered']
    #allocation8 [shape = 'u8[512]{0}', space=vmem, size = 0x400, scoped, tag = 'output window, operand 1, single buffered']
    #allocation9 [shape = 's32[1]{0}', space=sflag, size = 0x4, scoped, tag = 'scoped memory for tpu_custom_call.1']
    %9 = vsyncpa [#allocation3], 0
    %10 = vsyncpa [#allocation6], 0
    %11 = vsyncpa [#allocation4], 0
    %12 = vsyncpa [#allocation9], 0
    // Predicated region
    $region2: #{tpu_custom_call.1} parent=1 // pred_check
      _
    $region3: #{tpu_custom_call.1} parent=1 // pred_check_branch
      %14 = sbr.rel (0) target = $region5
    $region4: #{tpu_custom_call.1} parent=1 // pred_region
      %s16 = ssub.s32 128, 128
      %17 = vsyncadd [#allocation3], %s16
      %s19 = sshll.u32 [#allocation2], 4
      %s20 = int_to_ptr.vmem [resolvable:$true] %s19
      %22 = dma.hbm_to_vmem [thread:$0]  %s0, 128, %s20, [#allocation3]
    $region5: #{tpu_custom_call.1} parent=1 // pred_fallthru
      _
    // Predicated region
    $region6: #{tpu_custom_call.1} parent=1 // pred_check
      _
    $region7: #{tpu_custom_call.1} parent=1 // pred_check_branch
      %24 = sbr.rel (0) target = $region9
    $region8: #{tpu_custom_call.1} parent=1 // pred_region
      %s26 = ssub.s32 128, 128
      %27 = vsyncadd [#allocation6], %s26
      %s29 = sshll.u32 [#allocation5], 4
      %s30 = int_to_ptr.vmem [resolvable:$true] %s29
      %32 = dma.hbm_to_vmem [thread:$0]  %s1, 128, %s30, [#allocation6]
    $region9: #{tpu_custom_call.1} parent=1 // pred_fallthru
      _
    // Predicated region
    $region10: #{tpu_custom_call.1} parent=1 // pred_check
      _
    $region11: #{tpu_custom_call.1} parent=1 // pred_check_branch
      %34 = sbr.rel (0) target = $region13
    $region12: #{tpu_custom_call.1} parent=1 // pred_region
      %35 = dma.done [#allocation3], 128
    $region13: #{tpu_custom_call.1} parent=1 // pred_fallthru
      _
    // Predicated region
    $region14: #{tpu_custom_call.1} parent=1 // pred_check
      _
    $region15: #{tpu_custom_call.1} parent=1 // pred_check_branch
      %37 = sbr.rel (0) target = $region17
    $region16: #{tpu_custom_call.1} parent=1 // pred_region
      %38 = dma.done [#allocation6], 128
    $region17: #{tpu_custom_call.1} parent=1 // pred_fallthru
      _
    %v39 = vld [vmem:[#allocation2] sm:$0xff]
    %v40 = vld [vmem:[#allocation5] sm:$0xff]
    %v41 = vmul.f32 %v39, %v39
    %vm42 = vcmask 261120
    %v43 = vsel %vm42, %v41, 0.0
    %44 = vadd.xlane.f32.xlu0 %v43
    %v45 = vpop.xlane.xlu0 %44
    %v46 = vmax.f32 %v45, 1e-24
    %v47 = vrsqrt.pop %v46
    %v48 = vmul.f32 %v47, 1.4142135
    %v49 = vmul.f32 %v40, %v40
    %v50 = vsel %vm42, %v49, 0.0
    %51 = vadd.xlane.f32.xlu0 %v50
    %v52 = vpop.xlane.xlu0 %51
    %v53 = vmax.f32 %v52, 1e-24
    %v54 = vrsqrt.pop %v53
    %v55 = vmul.f32 %v54, 1.4142135
    %v56 = vmul.f32 %v39, %v48
    %v57 = vmul.f32 %v40, %v55
    %v58 = vpack.c.bf16 %v56, %v56
    %vm59 = vcmask 257024
    %60 = vst.msk [vmem:[#allocation7] sm:$0xf] %vm59, %v58
    %v61 = vpack.c.bf16 %v57, %v57
    %s62 = scalar_lea.vmem [#allocation7], 4
    %63 = vst.msk [vmem:[%s62] sm:$0xf] %vm59, %v61
    %v64 = vmul.f32 %v56, %v57
    %v65 = vsel %vm42, %v64, 0.0
    %66 = vadd.xlane.f32.xlu0 %v65
    %v67 = vpop.xlane.xlu0 %66
    %v68 = vrot.slane %v67, 4
    %v69 = vadd.f32 %v67, %v68
    %v70 = vrot.slane %v69, 2
    %v71 = vadd.f32 %v69, %v70
    %v72 = vrot.slane %v71, 1
    %v73 = vadd.f32 %v71, %v72
    %vm74 = vcmask 0
    %75 = vst.msk [vmem:[#allocation8] sm:$0x1] %vm74, %v73
    // Predicated region
    $region18: #{tpu_custom_call.1} parent=1 // pred_check
      _
    $region19: #{tpu_custom_call.1} parent=1 // pred_check_branch
      %77 = sbr.rel (0) target = $region21
    $region20: #{tpu_custom_call.1} parent=1 // pred_region
      %s79 = ssub.s32 128, 128
      %80 = vsyncadd [#allocation4], %s79
      %s81 = sshll.u32 [#allocation7], 4
      %s82 = int_to_ptr.vmem [resolvable:$true] %s81
      %87 = dma.vmem_to_hbm [thread:$0]  %s82, 128, %s2, [#allocation4], 64, 64, 4
    $region21: #{tpu_custom_call.1} parent=1 // pred_fallthru
      _
    // Predicated region
    $region22: #{tpu_custom_call.1} parent=1 // pred_check
      _
    $region23: #{tpu_custom_call.1} parent=1 // pred_check_branch
      %89 = sbr.rel (0) target = $region25
    $region24: #{tpu_custom_call.1} parent=1 // pred_region
      %s91 = ssub.s32 16, 16
      %92 = vsyncadd [#allocation9], %s91
      %s94 = sshll.u32 [#allocation8], 4
      %s95 = int_to_ptr.vmem [resolvable:$true] %s94
      %97 = dma.vmem_to_hbm [thread:$0]  %s95, 16, %s3, [#allocation9]
    $region25: #{tpu_custom_call.1} parent=1 // pred_fallthru
      _
    // Predicated region
    $region26: #{tpu_custom_call.1} parent=1 // pred_check
      _
    $region27: #{tpu_custom_call.1} parent=1 // pred_check_branch
      %99 = sbr.rel (0) target = $region29
    $region28: #{tpu_custom_call.1} parent=1 // pred_region
      %100 = dma.done [#allocation4], 128
    $region29: #{tpu_custom_call.1} parent=1 // pred_fallthru
      _
    // Predicated region
    $region30: #{tpu_custom_call.1} parent=1 // pred_check
      _
    $region31: #{tpu_custom_call.1} parent=1 // pred_check_branch
      %102 = sbr.rel (0) target = $region33
    $region32: #{tpu_custom_call.1} parent=1 // pred_region
      %103 = dma.done [#allocation9], 16
    $region33: #{tpu_custom_call.1} parent=1 // pred_fallthru
      _
    %104 = vsyncpa [#allocation3], 1
    %105 = vsyncpa [#allocation6], 1
    %106 = vsyncpa [#allocation4], 1
    %107 = vsyncpa [#allocation9], 1

</llo_original>
